<compile_context>
chip_gen: v6e
topology: v6e:2x2x1
jax: 0.10.0
libtpu: 0.0.40
codegen_flags: <defaults>
</compile_context>

<pallas_src>
import functools

import jax
import jax.numpy as jnp
from jax.experimental import pallas as pl
from jax.experimental.pallas import tpu as pltpu


def _round_up(x, m):
    return (x + m - 1) // m * m


def _attention_kernel(nodes_ref, w_ref, b_ref, out_ref, m_ref, l_ref, *,
                      n_rows, block_rows):
    p = pl.program_id(0)        # 0 = stats pass, 1 = scale pass
    i = pl.program_id(1)        # node-tile index
    n_tiles = pl.num_programs(1)

    def tile_scores():
        nodes = nodes_ref[...].astype(jnp.float32)                  # (TM, H)
        # Linear(hidden, 1): VPU multiply + lane reduce (a width-1 MXU matmul
        # would use 1 of 128/256 output lanes and pay result-FIFO latency).
        s = jnp.sum(nodes * w_ref[...], axis=-1, keepdims=True) + b_ref[0, 0]
        # Mask rows past N (ragged last tile) so they never influence the
        # softmax statistics or the output.
        row = (jax.lax.broadcasted_iota(jnp.int32, (block_rows, 1), 0)
               + i * block_rows)
        return nodes, jnp.where(row < n_rows, s, jnp.float32(-1e30))

    @pl.when(p == 0)
    def _stats_pass():
        @pl.when(i == 0)
        def _init():
            m_ref[...] = jnp.full_like(m_ref, -jnp.inf)
            l_ref[...] = jnp.zeros_like(l_ref)

        _, s = tile_scores()
        m_old = m_ref[...]                                          # (1, 1)
        m_new = jnp.maximum(m_old, jnp.max(s, axis=0, keepdims=True))
        l_new = (l_ref[...] * jnp.exp(m_old - m_new)
                 + jnp.sum(jnp.exp(s - m_new), axis=0, keepdims=True))
        m_ref[...] = m_new
        l_ref[...] = l_new

        @pl.when(i == n_tiles - 1)
        def _finalize():
            # One exact reciprocal per kernel invocation (essentially free);
            # pass 1 multiplies by it.
            l_ref[...] = 1.0 / l_new

    @pl.when(p == 1)
    def _scale_pass():
        nodes, s = tile_scores()
        attn = jnp.exp(s - m_ref[...]) * l_ref[...]                 # (TM, 1)
        out_ref[...] = (nodes * attn).astype(out_ref.dtype)


def attention_mechanism(nodes, weight, bias, *, block_rows=None):
    """nodes: (N, H) float dtype; weight: (1, H) (PyTorch Linear layout); bias: (1,)."""
    n, h = nodes.shape
    w = weight.reshape(1, h).astype(jnp.float32)
    b = bias.reshape(1, 1).astype(jnp.float32)

    itemsize = jnp.dtype(nodes.dtype).itemsize
    pack = max(8, 32 // itemsize)      # sublane packing: f32 -> 8, bf16 -> 16, int8 -> 32
    lane_h = _round_up(h, 128)         # VMEM tiles are lane-padded to 128

    # Physical VMEM: 64 MiB on v7x, 128 MiB on v5e/v6e.  Stay well inside it.
    try:
        vmem_cap = int(pltpu.get_tpu_info().vmem_capacity_bytes)
    except Exception:  # hardware query unavailable
        vmem_cap = 64 * 1024 * 1024
    tile_budget = min(32 * 1024 * 1024, vmem_cap // 4)

    # Rows per tile from the VMEM budget: in + out tiles, double-buffered, at
    # lane-padded width, plus ~512 B/row for the f32 (TM, 1) score temporaries.
    # The 2048-row cap bounds vreg/VMEM pressure of the lane-sparse (TM, 1)
    # intermediates while keeping tiles far larger than the old fixed 256.
    per_row = 4 * lane_h * itemsize + 512
    tm = tile_budget // per_row if block_rows is None else block_rows
    tm = max(pack, (min(tm, 2048) // pack) * pack)
    if tm >= n:
        tm = n                         # single full-extent block (always legal)
    n_tiles = pl.cdiv(n, tm)

    est = (4 * tm * lane_h * itemsize  # nodes + out tiles, double-buffered
           + 2 * 8 * lane_h * 4        # weight row
           + 64 * 1024)                # (m, l) scratch + slack
    vmem_limit = int(min(max(2 * est, 4 * 1024 * 1024), int(0.8 * vmem_cap)))

    out = pl.pallas_call(
        functools.partial(_attention_kernel, n_rows=n, block_rows=tm),
        out_shape=jax.ShapeDtypeStruct((n, h), nodes.dtype),
        grid_spec=pltpu.PrefetchScalarGridSpec(
            num_scalar_prefetch=0,
            grid=(2, n_tiles),
            in_specs=[
                pl.BlockSpec((tm, h), lambda p, i: (i, 0)),           # nodes tile
                pl.BlockSpec((1, h), lambda p, i: (0, 0)),            # weight row
                pl.BlockSpec(memory_space=pltpu.MemorySpace.SMEM),    # bias scalar
            ],
            # Pass 0 writes nothing: the out block stays pinned at block 0 (no
            # garbage writeback) and is only written as pass 1 walks the tiles.
            out_specs=pl.BlockSpec((tm, h), lambda p, i: (i * p, 0)),
            scratch_shapes=[pltpu.VMEM((1, 1), jnp.float32),    # running max m
                            pltpu.VMEM((1, 1), jnp.float32)],   # running sum l -> 1/l
        ),
        compiler_params=pltpu.CompilerParams(
            # Pass 0 is a sequential cross-tile reduction into the shared (m, l)
            # scratch and pass 1 depends on its final value, so both grid axes
            # stay "arbitrary" (megacore-splitting would split the scratch).
            dimension_semantics=("arbitrary", "arbitrary"),
            vmem_limit_bytes=vmem_limit,
        ),
    )(nodes, w, b)
    return out


def _reference(nodes, weight, bias):
    nodes_f32 = nodes.astype(jnp.float32)
    scores = nodes_f32 @ weight.astype(jnp.float32).T + bias.astype(jnp.float32)
    attn = jax.nn.softmax(scores, axis=0)
    return (nodes_f32 * attn).astype(nodes.dtype)


if __name__ == "__main__":
    key = jax.random.PRNGKey(0)

    # --- test 1: module-implied small shape (hidden=32), single tile ---
    N, H = 8, 32
    k1, k2, k3, key = jax.random.split(key, 4)
    bound = 1.0 / (H ** 0.5)
    weight = jax.random.uniform(k2, (1, H), jnp.float32, -bound, bound)
    bias = jax.random.uniform(k3, (1,), jnp.float32, -bound, bound)
    nodes = jax.random.normal(k1, (N, H), jnp.float32)

    out = jax.block_until_ready(attention_mechanism(nodes, weight, bias))
    ref = _reference(nodes, weight, bias)
    assert out.shape == (N, H) and out.dtype == nodes.dtype
    assert jnp.allclose(out, ref, atol=1e-4, rtol=1e-4)

    # --- test 2: multi-tile + ragged last tile, no wrapper pad / output slice ---
    N2, H2 = 100, 128
    k1, k2, k3, key = jax.random.split(key, 4)
    bound = 1.0 / (H2 ** 0.5)
    weight2 = jax.random.uniform(k2, (1, H2), jnp.float32, -bound, bound)
    bias2 = jax.random.uniform(k3, (1,), jnp.float32, -bound, bound)
    nodes2 = jax.random.normal(k1, (N2, H2), jnp.float32)

    out2 = jax.block_until_ready(attention_mechanism(nodes2, weight2, bias2, block_rows=32))
    ref2 = _reference(nodes2, weight2, bias2)
    assert out2.shape == (N2, H2)
    assert jnp.allclose(out2, ref2, atol=1e-4, rtol=1e-4)

    # --- test 3: bf16 path (16-sublane tile rounding, in-kernel f32 math) ---
    nodes3 = nodes2.astype(jnp.bfloat16)
    out3 = jax.block_until_ready(attention_mechanism(nodes3, weight2, bias2, block_rows=32))
    ref3 = _reference(nodes3, weight2, bias2)
    assert out3.dtype == jnp.bfloat16
    assert jnp.allclose(out3.astype(jnp.float32), ref3.astype(jnp.float32),
                        atol=3e-2, rtol=3e-2)

    print("KERNEL_OK")
</pallas_src>

<mosaic_0001>
module attributes {stable_mosaic.version = 11 : i64} {
  func.func @_attention_kernel(%arg0: i32, %arg1: i32, %arg2: memref<8x32xf32, #tpu.memory_space<vmem>>, %arg3: memref<1x32xf32, #tpu.memory_space<vmem>>, %arg4: memref<1x1xf32, #tpu.memory_space<smem>>, %arg5: memref<8x32xf32, #tpu.memory_space<vmem>>, %arg6: memref<1x1xf32, #tpu.memory_space<vmem>>, %arg7: memref<1x1xf32, #tpu.memory_space<vmem>>) attributes {dimension_semantics = [#tpu.dimension_semantics<arbitrary>, #tpu.dimension_semantics<arbitrary>], iteration_bounds = array<i64: 2, 1>, scalar_prefetch = 0 : i64, scratch_operands = 2 : i64, tpu.core_type = #tpu.core_type<tc>, window_params = [{transform_indices = @transform_0, window_bounds = array<i64: 8, 32>}, {pipeline_mode = #tpu.pipeline_mode<synchronous>, transform_indices = @transform_1, window_bounds = array<i64: 1, 32>}, {transform_indices = @transform_2, window_bounds = array<i64: 1, 1>}, {transform_indices = @transform_3, window_bounds = array<i64: 8, 32>}]} {
    %c0_i32 = arith.constant 0 : i32
    %0 = arith.cmpi eq, %arg0, %c0_i32 : i32
    %1 = arith.extui %0 : i1 to i32
    %c0_i32_0 = arith.constant 0 : i32
    %2 = arith.cmpi ne, %1, %c0_i32_0 : i32
    scf.if %2 {
      %c0_i32_2 = arith.constant 0 : i32
      %6 = arith.cmpi eq, %arg1, %c0_i32_2 : i32
      %7 = arith.extui %6 : i1 to i32
      %c0_i32_3 = arith.constant 0 : i32
      %8 = arith.cmpi ne, %7, %c0_i32_3 : i32
      scf.if %8 {
        %cst_23 = arith.constant 0xFF800000 : f32
        %45 = vector.broadcast %cst_23 : f32 to vector<1x1xf32>
        %c0_24 = arith.constant 0 : index
        %c0_25 = arith.constant 0 : index
        %46 = vector.load %arg6[%c0_24, %c0_25] : memref<1x1xf32, #tpu.memory_space<vmem>>, vector<1x1xf32>
        tpu.vector_store %arg6[%c0_24, %c0_25], %45 {strides = array<i32>} : memref<1x1xf32, #tpu.memory_space<vmem>>, vector<1x1xf32>,
        %cst_26 = arith.constant 0.000000e+00 : f32
        %47 = vector.broadcast %cst_26 : f32 to vector<1x1xf32>
        %c0_27 = arith.constant 0 : index
        %c0_28 = arith.constant 0 : index
        %48 = vector.load %arg7[%c0_27, %c0_28] : memref<1x1xf32, #tpu.memory_space<vmem>>, vector<1x1xf32>
        tpu.vector_store %arg7[%c0_27, %c0_28], %47 {strides = array<i32>} : memref<1x1xf32, #tpu.memory_space<vmem>>, vector<1x1xf32>,
      } else {
      }
      %c0 = arith.constant 0 : index
      %c0_4 = arith.constant 0 : index
      %9 = vector.load %arg2[%c0, %c0_4] : memref<8x32xf32, #tpu.memory_space<vmem>>, vector<8x32xf32>
      %c0_5 = arith.constant 0 : index
      %c0_6 = arith.constant 0 : index
      %10 = vector.load %arg3[%c0_5, %c0_6] : memref<1x32xf32, #tpu.memory_space<vmem>>, vector<1x32xf32>
      %11 = vector.broadcast %10 : vector<1x32xf32> to vector<8x32xf32>
      %12 = arith.mulf %9, %11 : vector<8x32xf32>
      %cst = arith.constant dense<0.000000e+00> : vector<8xf32>
      %13 = vector.multi_reduction <add>, %12, %cst [1] : vector<8x32xf32> to vector<8xf32>
      %14 = vector.shape_cast %13 : vector<8xf32> to vector<8x1xf32>
      %c0_7 = arith.constant 0 : index
      %c0_8 = arith.constant 0 : index
      %15 = memref.load %arg4[%c0_7, %c0_8] : memref<1x1xf32, #tpu.memory_space<smem>>
      %16 = vector.broadcast %15 : f32 to vector<8x1xf32>
      %17 = arith.addf %14, %16 : vector<8x1xf32>
      %18 = tpu.iota {dimensions = array<i32: 0>} : vector<8x1xi32>
      %c8_i32 = arith.constant 8 : i32
      %19 = arith.muli %arg1, %c8_i32 : i32
      %20 = vector.broadcast %19 : i32 to vector<8x1xi32>
      %21 = arith.addi %18, %20 : vector<8x1xi32>
      %c8_i32_9 = arith.constant 8 : i32
      %22 = vector.broadcast %c8_i32_9 : i32 to vector<8x1xi32>
      %23 = arith.cmpi slt, %21, %22 : vector<8x1xi32>
      %cst_10 = arith.constant -1.000000e+30 : f32
      %24 = vector.broadcast %cst_10 : f32 to vector<8x1xf32>
      %25 = arith.select %23, %17, %24 : vector<8x1xi1>, vector<8x1xf32>
      %c0_11 = arith.constant 0 : index
      %c0_12 = arith.constant 0 : index
      %26 = vector.load %arg6[%c0_11, %c0_12] : memref<1x1xf32, #tpu.memory_space<vmem>>, vector<1x1xf32>
      %cst_13 = arith.constant dense<0xFF800000> : vector<1xf32>
      %27 = vector.multi_reduction <maximumf>, %25, %cst_13 [0] : vector<8x1xf32> to vector<1xf32>
      %28 = vector.shape_cast %27 : vector<1xf32> to vector<1x1xf32>
      %29 = arith.maximumf %26, %28 : vector<1x1xf32>
      %c0_14 = arith.constant 0 : index
      %c0_15 = arith.constant 0 : index
      %30 = vector.load %arg7[%c0_14, %c0_15] : memref<1x1xf32, #tpu.memory_space<vmem>>, vector<1x1xf32>
      %31 = arith.subf %26, %29 : vector<1x1xf32>
      %32 = math.exp %31 : vector<1x1xf32>
      %33 = arith.mulf %30, %32 : vector<1x1xf32>
      %34 = vector.broadcast %29 : vector<1x1xf32> to vector<8x1xf32>
      %35 = arith.subf %25, %34 : vector<8x1xf32>
      %36 = math.exp %35 : vector<8x1xf32>
      %cst_16 = arith.constant dense<0.000000e+00> : vector<1xf32>
      %37 = vector.multi_reduction <add>, %36, %cst_16 [0] : vector<8x1xf32> to vector<1xf32>
      %38 = vector.shape_cast %37 : vector<1xf32> to vector<1x1xf32>
      %39 = arith.addf %33, %38 : vector<1x1xf32>
      %c0_17 = arith.constant 0 : index
      %c0_18 = arith.constant 0 : index
      %40 = vector.load %arg6[%c0_17, %c0_18] : memref<1x1xf32, #tpu.memory_space<vmem>>, vector<1x1xf32>
      tpu.vector_store %arg6[%c0_17, %c0_18], %29 {strides = array<i32>} : memref<1x1xf32, #tpu.memory_space<vmem>>, vector<1x1xf32>,
      %c0_19 = arith.constant 0 : index
      %c0_20 = arith.constant 0 : index
      %41 = vector.load %arg7[%c0_19, %c0_20] : memref<1x1xf32, #tpu.memory_space<vmem>>, vector<1x1xf32>
      tpu.vector_store %arg7[%c0_19, %c0_20], %39 {strides = array<i32>} : memref<1x1xf32, #tpu.memory_space<vmem>>, vector<1x1xf32>,
      %c0_i32_21 = arith.constant 0 : i32
      %42 = arith.cmpi eq, %arg1, %c0_i32_21 : i32
      %43 = arith.extui %42 : i1 to i32
      %c0_i32_22 = arith.constant 0 : i32
      %44 = arith.cmpi ne, %43, %c0_i32_22 : i32
      scf.if %44 {
        %cst_23 = arith.constant 1.000000e+00 : f32
        %45 = vector.broadcast %cst_23 : f32 to vector<1x1xf32>
        %46 = arith.divf %45, %39 : vector<1x1xf32>
        %c0_24 = arith.constant 0 : index
        %c0_25 = arith.constant 0 : index
        %47 = vector.load %arg7[%c0_24, %c0_25] : memref<1x1xf32, #tpu.memory_space<vmem>>, vector<1x1xf32>
        tpu.vector_store %arg7[%c0_24, %c0_25], %46 {strides = array<i32>} : memref<1x1xf32, #tpu.memory_space<vmem>>, vector<1x1xf32>,
      } else {
      }
    } else {
    }
    %c1_i32 = arith.constant 1 : i32
    %3 = arith.cmpi eq, %arg0, %c1_i32 : i32
    %4 = arith.extui %3 : i1 to i32
    %c0_i32_1 = arith.constant 0 : i32
    %5 = arith.cmpi ne, %4, %c0_i32_1 : i32
    scf.if %5 {
      %c0 = arith.constant 0 : index
      %c0_2 = arith.constant 0 : index
      %6 = vector.load %arg2[%c0, %c0_2] : memref<8x32xf32, #tpu.memory_space<vmem>>, vector<8x32xf32>
      %c0_3 = arith.constant 0 : index
      %c0_4 = arith.constant 0 : index
      %7 = vector.load %arg3[%c0_3, %c0_4] : memref<1x32xf32, #tpu.memory_space<vmem>>, vector<1x32xf32>
      %8 = vector.broadcast %7 : vector<1x32xf32> to vector<8x32xf32>
      %9 = arith.mulf %6, %8 : vector<8x32xf32>
      %cst = arith.constant dense<0.000000e+00> : vector<8xf32>
      %10 = vector.multi_reduction <add>, %9, %cst [1] : vector<8x32xf32> to vector<8xf32>
      %11 = vector.shape_cast %10 : vector<8xf32> to vector<8x1xf32>
      %c0_5 = arith.constant 0 : index
      %c0_6 = arith.constant 0 : index
      %12 = memref.load %arg4[%c0_5, %c0_6] : memref<1x1xf32, #tpu.memory_space<smem>>
      %13 = vector.broadcast %12 : f32 to vector<8x1xf32>
      %14 = arith.addf %11, %13 : vector<8x1xf32>
      %15 = tpu.iota {dimensions = array<i32: 0>} : vector<8x1xi32>
      %c8_i32 = arith.constant 8 : i32
      %16 = arith.muli %arg1, %c8_i32 : i32
      %17 = vector.broadcast %16 : i32 to vector<8x1xi32>
      %18 = arith.addi %15, %17 : vector<8x1xi32>
      %c8_i32_7 = arith.constant 8 : i32
      %19 = vector.broadcast %c8_i32_7 : i32 to vector<8x1xi32>
      %20 = arith.cmpi slt, %18, %19 : vector<8x1xi32>
      %cst_8 = arith.constant -1.000000e+30 : f32
      %21 = vector.broadcast %cst_8 : f32 to vector<8x1xf32>
      %22 = arith.select %20, %14, %21 : vector<8x1xi1>, vector<8x1xf32>
      %c0_9 = arith.constant 0 : index
      %c0_10 = arith.constant 0 : index
      %23 = vector.load %arg6[%c0_9, %c0_10] : memref<1x1xf32, #tpu.memory_space<vmem>>, vector<1x1xf32>
      %24 = vector.broadcast %23 : vector<1x1xf32> to vector<8x1xf32>
      %25 = arith.subf %22, %24 : vector<8x1xf32>
      %26 = math.exp %25 : vector<8x1xf32>
      %c0_11 = arith.constant 0 : index
      %c0_12 = arith.constant 0 : index
      %27 = vector.load %arg7[%c0_11, %c0_12] : memref<1x1xf32, #tpu.memory_space<vmem>>, vector<1x1xf32>
      %28 = vector.broadcast %27 : vector<1x1xf32> to vector<8x1xf32>
      %29 = arith.mulf %26, %28 : vector<8x1xf32>
      %30 = vector.broadcast %29 : vector<8x1xf32> to vector<8x32xf32>
      %31 = arith.mulf %6, %30 : vector<8x32xf32>
      %c0_13 = arith.constant 0 : index
      %c0_14 = arith.constant 0 : index
      %32 = vector.load %arg5[%c0_13, %c0_14] : memref<8x32xf32, #tpu.memory_space<vmem>>, vector<8x32xf32>
      tpu.vector_store %arg5[%c0_13, %c0_14], %31 {strides = array<i32>} : memref<8x32xf32, #tpu.memory_space<vmem>>, vector<8x32xf32>,
    } else {
    }
    return
  }
  func.func @transform_0(%arg0: i32, %arg1: i32) -> (i32, i32) {
    %c0_i32 = arith.constant 0 : i32
    %c0_i32_0 = arith.constant 0 : i32
    return %arg1, %c0_i32 : i32, i32
  }
  func.func @transform_1(%arg0: i32, %arg1: i32) -> (i32, i32) {
    %c0_i32 = arith.constant 0 : i32
    %c0_i32_0 = arith.constant 0 : i32
    %c0_i32_1 = arith.constant 0 : i32
    return %c0_i32, %c0_i32_0 : i32, i32
  }
  func.func @transform_2(%arg0: i32, %arg1: i32) -> (i32, i32) {
    %c0_i32 = arith.constant 0 : i32
    %c0_i32_0 = arith.constant 0 : i32
    %c0_i32_1 = arith.constant 0 : i32
    return %c0_i32, %c0_i32_0 : i32, i32
  }
  func.func @transform_3(%arg0: i32, %arg1: i32) -> (i32, i32) {
    %0 = arith.muli %arg1, %arg0 : i32
    %c0_i32 = arith.constant 0 : i32
    %c0_i32_0 = arith.constant 0 : i32
    return %0, %c0_i32 : i32, i32
  }
}

</mosaic_0001>

<llo_original>
// kernel: tpu_custom_call.1
$region0: #{tpu_custom_call.1}
  #allocation0 [shape = 'u32[]', space=smem, size = 0x4, offset = 0x4, fixed_abs, tag = 'smem constant byte address 0x4 - core index']
  #allocation1 [shape = 'u32[144,128]{1,0:T(1,128)}', space=vmem, size = 0x12000, scoped, tag = 'internal scratch']
  #allocation2 [shape = 'f32[1,1]{1,0:T(1,128)}', space=vmem, size = 0x200, scoped, tag = 'scratch operand']
  #allocation3 [shape = 'f32[1,1]{1,0:T(1,128)}', space=vmem, size = 0x200, scoped, tag = 'scratch operand']
  #allocation4 [shape = 'f32[1,1]{1,0:T(1,128)S(6)}', space=smem, size = 0x200, scoped, tag = 'scoped memory for tpu_custom_call.1']
  %s0 = inlined_call_operand.hbm [shape: f32[8,32], index: 0, kind: input, shape index: {}]
  %s1 = inlined_call_operand.vmem [shape: f32[1,32], index: 1, kind: input, shape index: {}]
  %s2 = inlined_call_operand.<no memory space> [shape: f32[1,1], index: 2, kind: input, shape index: {}]
  %s3 = inlined_call_operand.hbm [shape: f32[8,32], index: 3, kind: output, shape index: {}]
  %s4 = sld [smem:[#allocation0]]
  $region65: #{tpu_custom_call.1} parent=0
    _
  %s6 = ssub.s32 1, %s4
  %s7 = scalar_select 0, %s6, %s4
  %8 = sst [smem:[#allocation4]] %s2
  $region1: #{tpu_custom_call.1} parent=0
    #allocation5 [shape = 'u8[4096]{0}', space=vmem, size = 0x1000, scoped, tag = 'input window, operand 0, single buffered']
    #allocation6 [shape = 's32[2]{0}', space=sflag, size = 0x8, scoped, tag = 'scoped memory for tpu_custom_call.1']
    #allocation7 [shape = 's32[2]{0}', space=sflag, size = 0x8, scoped, tag = 'scoped memory for tpu_custom_call.1']
    #allocation8 [shape = 'u8[8192]{0}', space=vmem, size = 0x2000, scoped, tag = 'output window, operand 0']
    %9 = vsyncpa [#allocation6], 0
    %10 = vsyncpa [#allocation7], 0
    %s11 = scalar_lea.sflag [#allocation7], 1
    %12 = vsyncpa %s11, 0
    loop: start=0, step=1, limit=4
    $region2: #{tpu_custom_call.1} parent=1 // loop_pre_header
      _
    $region3: #{tpu_custom_call.1} parent=1 // loop_header
      %s14 = sphi 0, %s18
      %p15 = scmp.ge.s32.totalorder %s14, 4
      %s21 = sphi 0, %s33
      %s22 = sphi 0, %s29
      %s23 = sphi 0, %s21
      %s24 = sphi 0, %s22
      %s25 = sphi 0, %s23
      %s26 = sphi 0, %s24
      %s36 = sphi 0, %s38
      %s39 = sphi 0, %s36
      %s40 = sphi 0, %s39
      %s56 = sphi 0, %s40
      %s60 = sphi 0, %s60
      %s62 = sphi 0, %s60
      %s63 = sphi 0, %s62
      %s77 = sphi 0, %s63
      %s81 = sphi 0, %s81
      %s83 = sphi 0, %s81
      %s84 = sphi 0, %s83
      %s98 = sphi 0, %s84
      %s106 = sphi 0, %s108
      %s109 = sphi 0, %s106
      %s110 = sphi 0, %s109
      %s126 = sphi 0, %s110
    $region4: #{tpu_custom_call.1} parent=1 // loop_header_branch
      %17 = sbr.rel (%p15) target = $region8
    $region5: #{tpu_custom_call.1} parent=1 // loop_body
      %s19 = ssub.s32 %s14, 1
      %s20 = ssub.s32 %s14, 2
      %s27 = sadd.s32 1, %s22
      %p28 = scmp.ge.s32.totalorder %s27, 1
      %s29 = scalar_select %p28, 0, %s27
      %s30 = sadd.s32 1, %s21
      %s31 = scalar_select %p28, %s30, %s21
      %p32 = scmp.ge.s32.totalorder %s31, 2
      %s33 = scalar_select %p32, 0, %s31
      %s34 = ssub.s32 %s22, %s29
      %p35 = scmp.eq.s32.totalorder %s34, 0
      %s37 = sadd.s32 %s36, 1
      %s38 = scalar_select %p35, %s36, %s37
      %p41 = pneg %p35
      %p42 = scmp.eq.s32.totalorder %s14, 1
      %p43 = por %p41, %p42
      %p44 = scmp.ne.s32.totalorder %s36, %s39
      %p45 = scmp.eq.s32.totalorder %s14, 0
      %p46 = por %p44, %p45
      %p47 = scmp.ne.s32.totalorder %s36, %s39
      %p48 = scmp.eq.s32.totalorder %s19, 1
      %p49 = por %p47, %p48
      %p50 = scmp.ne.s32.totalorder %s39, %s40
      %p51 = scmp.eq.s32.totalorder %s19, 0
      %p52 = por %p50, %p51
      %p53 = scmp.ne.s32.totalorder %s39, %s40
      %p54 = scmp.eq.s32.totalorder %s20, 1
      %p55 = por %p53, %p54
      %p57 = scmp.ne.s32.totalorder %s40, %s56
      %p58 = scmp.eq.s32.totalorder %s20, 0
      %p59 = por %p57, %p58
      %s61 = sadd.s32 %s60, 1
      %p64 = scmp.eq.s32.totalorder %s14, 1
      %p65 = scmp.ne.s32.totalorder %s60, %s62
      %p66 = scmp.eq.s32.totalorder %s14, 0
      %p67 = por %p65, %p66
      %p68 = scmp.ne.s32.totalorder %s60, %s62
      %p69 = scmp.eq.s32.totalorder %s19, 1
      %p70 = por %p68, %p69
      %p71 = scmp.ne.s32.totalorder %s62, %s63
      %p72 = scmp.eq.s32.totalorder %s19, 0
      %p73 = por %p71, %p72
      %p74 = scmp.ne.s32.totalorder %s62, %s63
      %p75 = scmp.eq.s32.totalorder %s20, 1
      %p76 = por %p74, %p75
      %p78 = scmp.ne.s32.totalorder %s63, %s77
      %p79 = scmp.eq.s32.totalorder %s20, 0
      %p80 = por %p78, %p79
      %s82 = sadd.s32 %s81, 1
      %p85 = scmp.eq.s32.totalorder %s14, 1
      %p86 = scmp.ne.s32.totalorder %s81, %s83
      %p87 = scmp.eq.s32.totalorder %s14, 0
      %p88 = por %p86, %p87
      %p89 = scmp.ne.s32.totalorder %s81, %s83
      %p90 = scmp.eq.s32.totalorder %s19, 1
      %p91 = por %p89, %p90
      %p92 = scmp.ne.s32.totalorder %s83, %s84
      %p93 = scmp.eq.s32.totalorder %s19, 0
      %p94 = por %p92, %p93
      %p95 = scmp.ne.s32.totalorder %s83, %s84
      %p96 = scmp.eq.s32.totalorder %s20, 1
      %p97 = por %p95, %p96
      %p99 = scmp.ne.s32.totalorder %s84, %s98
      %p100 = scmp.eq.s32.totalorder %s20, 0
      %p101 = por %p99, %p100
      %s102 = smul.u32 %s22, %s21
      %s103 = smul.u32 %s29, %s33
      %s104 = ssub.s32 %s102, %s103
      %p105 = scmp.eq.s32.totalorder %s104, 0
      %s107 = sadd.s32 %s106, 1
      %s108 = scalar_select %p105, %s106, %s107
      %p111 = pneg %p105
      %p112 = scmp.eq.s32.totalorder %s14, 1
      %p113 = por %p111, %p112
      %p114 = scmp.ne.s32.totalorder %s106, %s109
      %p115 = scmp.eq.s32.totalorder %s14, 0
      %p116 = por %p114, %p115
      %p117 = scmp.ne.s32.totalorder %s106, %s109
      %p118 = scmp.eq.s32.totalorder %s19, 1
      %p119 = por %p117, %p118
      %p120 = scmp.ne.s32.totalorder %s109, %s110
      %p121 = scmp.eq.s32.totalorder %s19, 0
      %p122 = por %p120, %p121
      %p123 = scmp.ne.s32.totalorder %s109, %s110
      %p124 = scmp.eq.s32.totalorder %s20, 1
      %p125 = por %p123, %p124
      %p127 = scmp.ne.s32.totalorder %s110, %s126
      %p128 = scmp.eq.s32.totalorder %s20, 0
      %p129 = por %p127, %p128
      %p130 = scmp.le.s32.totalorder 1, %s14
      %p131 = scmp.lt.s32.totalorder %s14, 3
      %p132 = pnand %p130, %p131
      %p133 = pneg %p132
      // Predicated region
      $region9: #{tpu_custom_call.1} parent=5 // pred_check
        _
      $region10: #{tpu_custom_call.1} parent=5 // pred_check_branch
        %135 = sbr.rel (%p132) target = $region12
      $region11: #{tpu_custom_call.1} parent=5 // pred_region
        %s136 = ssub.s32 %s14, 1
        // Predicated region
        $region13: #{tpu_custom_call.1} parent=11 // pred_check
          %p137 = pneg %p52
        $region14: #{tpu_custom_call.1} parent=11 // pred_check_branch
          %139 = sbr.rel (%p137) target = $region16
        $region15: #{tpu_custom_call.1} parent=11 // pred_region
          %s141 = ssub.s32 128, 128
          %142 = vsyncadd [#allocation6], %s141
          %s143 = smul.addr %s24, 128
          %s144 = scalar_lea.hbm %s0, %s143
          %s146 = sshll.u32 [#allocation5], 4
          %s147 = int_to_ptr.vmem [resolvable:$true] %s146
          %149 = dma.hbm_to_vmem [thread:$0]  %s144, 128, %s147, [#allocation6]
        $region16: #{tpu_custom_call.1} parent=11 // pred_fallthru
          _
        // Predicated region
        $region17: #{tpu_custom_call.1} parent=11 // pred_check
          %p150 = pneg %p73
        $region18: #{tpu_custom_call.1} parent=11 // pred_check_branch
          %152 = sbr.rel (%p150) target = $region20
        $region19: #{tpu_custom_call.1} parent=11 // pred_region
          _
        $region20: #{tpu_custom_call.1} parent=11 // pred_fallthru
          _
        // Predicated region
        $region21: #{tpu_custom_call.1} parent=11 // pred_check
          %p153 = pneg %p94
        $region22: #{tpu_custom_call.1} parent=11 // pred_check_branch
          %155 = sbr.rel (%p153) target = $region24
        $region23: #{tpu_custom_call.1} parent=11 // pred_region
          _
        $region24: #{tpu_custom_call.1} parent=11 // pred_fallthru
          _
      $region12: #{tpu_custom_call.1} parent=5 // pred_fallthru
        _
      %p156 = scmp.lt.s32.totalorder %s14, 2
      // Predicated region
      $region25: #{tpu_custom_call.1} parent=5 // pred_check
        %p157 = pneg %p156
      $region26: #{tpu_custom_call.1} parent=5 // pred_check_branch
        %159 = sbr.rel (%p157) target = $region28
      $region27: #{tpu_custom_call.1} parent=5 // pred_region
        _
      $region28: #{tpu_custom_call.1} parent=5 // pred_fallthru
        _
      %p160 = scmp.le.s32.totalorder 1, %s14
      %p161 = scmp.lt.s32.totalorder %s14, 3
      %p162 = pnand %p160, %p161
      %p163 = pneg %p162
      // Predicated region
      $region29: #{tpu_custom_call.1} parent=5 // pred_check
        _
      $region30: #{tpu_custom_call.1} parent=5 // pred_check_branch
        %165 = sbr.rel (%p162) target = $region32
      $region31: #{tpu_custom_call.1} parent=5 // pred_region
        %s166 = ssub.s32 %s14, 1
        // Predicated region
        $region33: #{tpu_custom_call.1} parent=31 // pred_check
          %p167 = pneg %p52
        $region34: #{tpu_custom_call.1} parent=31 // pred_check_branch
          %169 = sbr.rel (%p167) target = $region36
        $region35: #{tpu_custom_call.1} parent=31 // pred_region
          %170 = dma.done [#allocation6], 128
        $region36: #{tpu_custom_call.1} parent=31 // pred_fallthru
          _
        %p171 = pneg %p52
        %p172 = pneg %p49
        %p173 = pneg %p73
        %p174 = pneg %p70
        %p175 = pneg %p94
        %p176 = pneg %p91
        %p177 = pneg %p122
        %p178 = pneg %p119
        %s179 = sand.u32 %s109, 1
        %s180 = scalar_lea.sflag [#allocation7], %s179
        %s181 = sand.u32 %s109, 1
        %s182 = smul.addr %s181, 8
        %s183 = scalar_lea.vmem [#allocation8], %s182
        %s184 = smul.u32 %s24, %s23
        %p185 = scmp.eq.s32.totalorder %s23, 0
        // Predicated region
        $region37: #{tpu_custom_call.1} parent=31 // pred_check
          %p186 = pneg %p185
        $region38: #{tpu_custom_call.1} parent=31 // pred_check_branch
          %188 = sbr.rel (%p186) target = $region40
        $region39: #{tpu_custom_call.1} parent=31 // pred_region
          %p189 = scmp.eq.s32.totalorder %s24, 0
          // Predicated region
          $region41: #{tpu_custom_call.1} parent=39 // pred_check
            %p190 = pneg %p189
          $region42: #{tpu_custom_call.1} parent=39 // pred_check_branch
            %192 = sbr.rel (%p190) target = $region44
          $region43: #{tpu_custom_call.1} parent=39 // pred_region
            %vm193 = vcmask 0
            %194 = vst.msk [vmem:[#allocation2] sm:$0x1] %vm193, -inf
            %195 = vst.msk [vmem:[#allocation3] sm:$0x1] %vm193, 0.0
          $region44: #{tpu_custom_call.1} parent=39 // pred_fallthru
            _
          %v196 = vld [vmem:[#allocation5] sm:$0xff]
          %v197 = vld [vmem:[%s1] sm:$0x1]
          %v199 = vlaneseq
          %v200 = vshrl.u32 %v199, 7
          %v201 = vsub.s32 0, %v200
          %v202 = vrot.slane %v197, %v201
          %v204 = vmul.f32 %v196, %v202
          %vm205 = vcmask 261120
          %v206 = vsel %vm205, %v204, 0.0
          %207 = vadd.xlane.f32.xlu0 %v206
          %v208 = vpop.xlane.xlu0 %207
          %s209 = sld [smem:[#allocation4]]
          %v210 = vstv %s209
          %v211 = vadd.f32 %v208, %v210
          %v212 = vlaneseq
          %v213 = vshrl.u32 %v212, 7
          %s214 = smul.u32 %s24, 8
          %v215 = vstv %s214
          %v216 = vadd.s32 %v213, %v215
          %vm217 = vcmp.lt.s32.totalorder %v216, 8
          %v218 = vsel %vm217, %v211, -1e+30
          %v219 = vld [vmem:[#allocation2] sm:$0x1]
          %v220 = vrot.slane %v218, 4
          %v221 = vmax.f32 %v218, %v220
          %v222 = vrot.slane %v221, 2
          %v223 = vmax.f32 %v221, %v222
          %v224 = vrot.slane %v223, 1
          %v225 = vmax.f32 %v223, %v224
          %v226 = vmax.f32 %v219, %v225
          %v227 = vld [vmem:[#allocation3] sm:$0x1]
          %v228 = vsub.f32 %v219, %v226
          %v229 = vmul.f32 %v228, 1.442695
          %v230 = vpow.pop %v229
          %v231 = vmul.f32 %v227, %v230
          %v233 = vlaneseq
          %v234 = vshrl.u32 %v233, 7
          %v235 = vsub.s32 0, %v234
          %v236 = vrot.slane %v226, %v235
          %v238 = vsub.f32 %v218, %v236
          %v239 = vmul.f32 %v238, 1.442695
          %v240 = vpow.pop %v239
          %vm241 = vcmask 7168
          %v242 = vsel %vm241, %v240, 0.0
          %v243 = vrot.slane %v242, 4
          %v244 = vadd.f32 %v242, %v243
          %v245 = vrot.slane %v244, 2
          %v246 = vadd.f32 %v244, %v245
          %v247 = vrot.slane %v246, 1
          %v248 = vadd.f32 %v246, %v247
          %v249 = vadd.f32 %v231, %v248
          %vm250 = vcmask 0
          %251 = vst.msk [vmem:[#allocation2] sm:$0x1] %vm250, %v226
          %252 = vst.msk [vmem:[#allocation3] sm:$0x1] %vm250, %v249
          // Predicated region
          $region45: #{tpu_custom_call.1} parent=39 // pred_check
            %p253 = pneg %p189
          $region46: #{tpu_custom_call.1} parent=39 // pred_check_branch
            %255 = sbr.rel (%p253) target = $region48
          $region47: #{tpu_custom_call.1} parent=39 // pred_region
            %v256 = vrcp.pop %v249
            %v257 = vmul.f32 1.0, %v256
            %258 = vst.msk [vmem:[#allocation3] sm:$0x1] %vm250, %v257
          $region48: #{tpu_custom_call.1} parent=39 // pred_fallthru
            _
        $region40: #{tpu_custom_call.1} parent=31 // pred_fallthru
          _
        %p259 = scmp.eq.s32.totalorder %s23, 1
        // Predicated region
        $region49: #{tpu_custom_call.1} parent=31 // pred_check
          %p260 = pneg %p259
        $region50: #{tpu_custom_call.1} parent=31 // pred_check_branch
          %262 = sbr.rel (%p260) target = $region52
        $region51: #{tpu_custom_call.1} parent=31 // pred_region
          %v263 = vld [vmem:[#allocation5] sm:$0xff]
          %v264 = vld [vmem:[%s1] sm:$0x1]
          %v266 = vlaneseq
          %v267 = vshrl.u32 %v266, 7
          %v268 = vsub.s32 0, %v267
          %v269 = vrot.slane %v264, %v268
          %v271 = vmul.f32 %v263, %v269
          %vm272 = vcmask 261120
          %v273 = vsel %vm272, %v271, 0.0
          %274 = vadd.xlane.f32.xlu0 %v273
          %v275 = vpop.xlane.xlu0 %274
          %s276 = sld [smem:[#allocation4]]
          %v277 = vstv %s276
          %v278 = vadd.f32 %v275, %v277
          %v279 = vlaneseq
          %v280 = vshrl.u32 %v279, 7
          %s281 = smul.u32 %s24, 8
          %v282 = vstv %s281
          %v283 = vadd.s32 %v280, %v282
          %vm284 = vcmp.lt.s32.totalorder %v283, 8
          %v285 = vsel %vm284, %v278, -1e+30
          %v286 = vld [vmem:[#allocation2] sm:$0x1]
          %v288 = vlaneseq
          %v289 = vshrl.u32 %v288, 7
          %v290 = vsub.s32 0, %v289
          %v291 = vrot.slane %v286, %v290
          %v293 = vsub.f32 %v285, %v291
          %v294 = vmul.f32 %v293, 1.442695
          %v295 = vpow.pop %v294
          %v296 = vld [vmem:[#allocation3] sm:$0x1]
          %v298 = vlaneseq
          %v299 = vshrl.u32 %v298, 7
          %v300 = vsub.s32 0, %v299
          %v301 = vrot.slane %v296, %v300
          %v303 = vmul.f32 %v295, %v301
          %305 = vset.pattern.permute.xlu0 0
          %306 = vperm.xlu0 %305, %v303
          %v307 = vpop.permute.xlu0 %306
          %v309 = vmul.f32 %v263, %v307
          %310 = vst.msk [vmem:[%s183] sm:$0xff] %vm272, %v309
        $region52: #{tpu_custom_call.1} parent=31 // pred_fallthru
          _
        %s311 = sand.u32 %s109, 1
        %s312 = scalar_lea.sflag [#allocation7], %s311
        %s313 = sand.u32 %s109, 1
        %s314 = smul.addr %s313, 8
        %s315 = scalar_lea.vmem [#allocation8], %s314
        // Predicated region
        $region53: #{tpu_custom_call.1} parent=31 // pred_check
          %p316 = pneg %p119
        $region54: #{tpu_custom_call.1} parent=31 // pred_check_branch
          %318 = sbr.rel (%p316) target = $region56
        $region55: #{tpu_custom_call.1} parent=31 // pred_region
          %s319 = smul.u32 %s24, %s23
          %s321 = ssub.s32 128, 128
          %322 = vsyncadd %s312, %s321
          %s323 = smul.addr %s319, 128
          %s324 = scalar_lea.hbm %s3, %s323
          %s326 = sshll.u32 %s315, 4
          %s327 = int_to_ptr.vmem [resolvable:$true] %s326
          %329 = dma.vmem_to_hbm [thread:$0]  %s327, 128, %s324, %s312
        $region56: #{tpu_custom_call.1} parent=31 // pred_fallthru
          _
      $region32: #{tpu_custom_call.1} parent=5 // pred_fallthru
        _
      %p330 = scmp.le.s32.totalorder 2, %s14
      // Predicated region
      $region57: #{tpu_custom_call.1} parent=5 // pred_check
        %p331 = pneg %p330
      $region58: #{tpu_custom_call.1} parent=5 // pred_check_branch
        %333 = sbr.rel (%p331) target = $region60
      $region59: #{tpu_custom_call.1} parent=5 // pred_region
        %s334 = ssub.s32 %s14, 2
        // Predicated region
        $region61: #{tpu_custom_call.1} parent=59 // pred_check
          %p335 = pneg %p125
        $region62: #{tpu_custom_call.1} parent=59 // pred_check_branch
          %337 = sbr.rel (%p335) target = $region64
        $region63: #{tpu_custom_call.1} parent=59 // pred_region
          %s338 = sand.u32 %s110, 1
          %s339 = scalar_lea.sflag [#allocation7], %s338
          %s340 = sand.u32 %s110, 1
          %s341 = smul.addr %s340, 8
          %s342 = scalar_lea.vmem [#allocation8], %s341
          %343 = dma.done %s339, 128
        $region64: #{tpu_custom_call.1} parent=59 // pred_fallthru
          _
      $region60: #{tpu_custom_call.1} parent=5 // pred_fallthru
        _
    $region6: #{tpu_custom_call.1} parent=1 // loop_footer
      %s18 = sadd.s32 1, %s14
    $region7: #{tpu_custom_call.1} parent=1 // loop_footer_branch
      %13 = sbr.rel target = $region3
    $region8: #{tpu_custom_call.1} parent=1 // loop_exit
      _
    %344 = vsyncpa [#allocation6], 1
    %s345 = scalar_lea.sflag [#allocation6], 1
    %346 = vsyncpa %s345, 1
    %347 = vsyncpa [#allocation7], 1
    %s348 = scalar_lea.sflag [#allocation7], 1
    %349 = vsyncpa %s348, 1

</llo_original>
